<compile_context>
chip_gen: v7x
topology: tpu7x:2x2x1
jax: 0.10.0
libtpu: 0.0.40
codegen_flags: <defaults>
</compile_context>

<pallas_src>
import functools

import jax
import jax.numpy as jnp
from jax.experimental import pallas as pl
from jax.experimental.pallas import tpu as pltpu


def _transition_kernel(x_ref, w_ref, o_ref, *, matmul_dtype):
    # x_ref: (4, TP, C)  -- four 2x2-window planes of TP pooled-pixel positions
    # w_ref: (C, outC)   -- 1x1 conv weight (transposed), resident across the grid
    # o_ref: (TP, outC)
    # MaxPool2d(2,2): per-lane VPU maximum across the 4 window planes (f32).
    pooled = jnp.maximum(jnp.maximum(x_ref[0], x_ref[1]),
                         jnp.maximum(x_ref[2], x_ref[3]))
    # 1x1 conv (no bias) == GEMM; bf16 inputs + f32 accumulation on the MXU.
    o_ref[...] = jnp.dot(
        pooled.astype(matmul_dtype), w_ref[...],
        preferred_element_type=jnp.float32,
    ).astype(o_ref.dtype)


def _choose_tp(P, C, outC, x_itemsize, budget_bytes=24 * 1024 * 1024, max_tp=2048):
    """Largest P-tile whose double-buffered blocks fit the VMEM budget."""
    per_row = 2 * (4 * C * x_itemsize + outC * 4)   # 2-deep input + output buffers
    cap = max(8, min(max_tp, budget_bytes // max(per_row, 1)))
    if P <= cap:
        return P
    t = (cap // 8) * 8
    while t >= 8:
        if P % t == 0:                  # TP must divide P and be a multiple of 8
            return t
        t -= 8
    return P                            # fallback: whole-P block


def conv2d_transition_block(x_nchw, weight_oi, *, matmul_dtype=jnp.bfloat16):
    """MaxPool2d(2,2) followed by Conv2d(inC, outC, kernel_size=1, bias=False).

    x_nchw: (N, C, H, W) float32; weight_oi: (outC, inC) (PyTorch (outC, inC, 1, 1) squeezed).
    Returns NCHW (N, outC, H//2, W//2).
    """
    N, C, H, W = x_nchw.shape
    outC, inC = weight_oi.shape
    assert inC == C and H % 2 == 0 and W % 2 == 0
    Hp, Wp = H // 2, W // 2
    P = Hp * Wp

    # Single-transpose regroup: NCHW -> (N, C, Hp, 2, Wp, 2) -> (N, 2, 2, Hp, Wp, C)
    # -> (N, 4, P, C).  Window axis (4) is kept OUTSIDE the tiled (P, C) dims.
    x_win = (
        x_nchw.reshape(N, C, Hp, 2, Wp, 2)
        .transpose(0, 3, 5, 2, 4, 1)
        .reshape(N, 4, P, C)
    )

    w_t = weight_oi.T.astype(matmul_dtype)          # (C, outC), resident in VMEM

    TP = _choose_tp(P, C, outC, x_win.dtype.itemsize)
    grid = (N, P // TP)

    kernel = functools.partial(_transition_kernel, matmul_dtype=matmul_dtype)

    out = pl.pallas_call(
        kernel,
        out_shape=jax.ShapeDtypeStruct((N, P, outC), x_nchw.dtype),
        grid_spec=pltpu.PrefetchScalarGridSpec(
            num_scalar_prefetch=0,
            grid=grid,
            in_specs=[
                pl.BlockSpec((None, 4, TP, C), lambda n, p: (n, 0, p, 0)),
                pl.BlockSpec((C, outC), lambda n, p: (0, 0)),
            ],
            out_specs=pl.BlockSpec((None, TP, outC), lambda n, p: (n, p, 0)),
        ),
        compiler_params=pltpu.CompilerParams(
            dimension_semantics=("parallel", "parallel"),
            vmem_limit_bytes=48 * 1024 * 1024,
        ),
    )(x_win, w_t)

    # NOTE: converted back to NCHW to match the PyTorch module; if the consumer accepts
    # NHWC, drop this transpose to save one HBM round trip of the activations.
    return out.reshape(N, Hp, Wp, outC).transpose(0, 3, 1, 2)


def _reference(x_nchw, weight_oi):
    # Pure-JAX f32 reference: MaxPool2d(2,2) then 1x1 conv (no bias), NCHW.
    pooled = jax.lax.reduce_window(
        x_nchw, -jnp.inf, jax.lax.max,
        window_dimensions=(1, 1, 2, 2),
        window_strides=(1, 1, 2, 2),
        padding="VALID",
    )
    return jnp.einsum("nchw,oc->nohw", pooled, weight_oi)


if __name__ == "__main__":
    key = jax.random.PRNGKey(0)
    k_x, k_w = jax.random.split(key)

    N, inC, H, W = 2, 4, 16, 16
    outC = 8

    x = jax.random.normal(k_x, (N, inC, H, W), dtype=jnp.float32)
    # Deterministic params (PyTorch weight shape (outC, inC, 1, 1) -> (outC, inC))
    weight = jax.random.normal(k_w, (outC, inC), dtype=jnp.float32) * 0.1

    y = conv2d_transition_block(x, weight)
    y = jax.block_until_ready(y)

    y_ref = _reference(x, weight)
    assert y.shape == (N, outC, H // 2, W // 2), y.shape
    # bf16 GEMM inputs with f32 accumulation -> loosened tolerance vs the f32 reference.
    assert jnp.allclose(y, y_ref, atol=1e-2, rtol=1e-2), float(jnp.max(jnp.abs(y - y_ref)))

    print("KERNEL_OK")
</pallas_src>

<mosaic_0001>
module attributes {stable_mosaic.version = 11 : i64} {
  func.func @_transition_kernel(%arg0: i32, %arg1: i32, %arg2: memref<1x4x64x4xf32, #tpu.memory_space<vmem>>, %arg3: memref<4x8xbf16, #tpu.memory_space<vmem>>, %arg4: memref<1x64x8xf32, #tpu.memory_space<vmem>>) attributes {dimension_semantics = [#tpu.dimension_semantics<parallel>, #tpu.dimension_semantics<parallel>], iteration_bounds = array<i64: 2, 1>, scalar_prefetch = 0 : i64, scratch_operands = 0 : i64, tpu.core_type = #tpu.core_type<tc>, window_params = [{transform_indices = @transform_0, window_bounds = array<i64: 1, 4, 64, 4>}, {pipeline_mode = #tpu.pipeline_mode<synchronous>, transform_indices = @transform_1, window_bounds = array<i64: 4, 8>}, {transform_indices = @transform_2, window_bounds = array<i64: 1, 64, 8>}]} {
    %c0 = arith.constant 0 : index
    %c0_0 = arith.constant 0 : index
    %c0_1 = arith.constant 0 : index
    %c0_2 = arith.constant 0 : index
    %0 = vector.load %arg2[%c0, %c0_0, %c0_1, %c0_2] : memref<1x4x64x4xf32, #tpu.memory_space<vmem>>, vector<1x1x64x4xf32>
    %1 = vector.shape_cast %0 : vector<1x1x64x4xf32> to vector<64x4xf32>
    %c0_3 = arith.constant 0 : index
    %c1 = arith.constant 1 : index
    %c0_4 = arith.constant 0 : index
    %c0_5 = arith.constant 0 : index
    %2 = vector.load %arg2[%c0_3, %c1, %c0_4, %c0_5] : memref<1x4x64x4xf32, #tpu.memory_space<vmem>>, vector<1x1x64x4xf32>
    %3 = vector.shape_cast %2 : vector<1x1x64x4xf32> to vector<64x4xf32>
    %4 = arith.maximumf %1, %3 : vector<64x4xf32>
    %c0_6 = arith.constant 0 : index
    %c2 = arith.constant 2 : index
    %c0_7 = arith.constant 0 : index
    %c0_8 = arith.constant 0 : index
    %5 = vector.load %arg2[%c0_6, %c2, %c0_7, %c0_8] : memref<1x4x64x4xf32, #tpu.memory_space<vmem>>, vector<1x1x64x4xf32>
    %6 = vector.shape_cast %5 : vector<1x1x64x4xf32> to vector<64x4xf32>
    %c0_9 = arith.constant 0 : index
    %c3 = arith.constant 3 : index
    %c0_10 = arith.constant 0 : index
    %c0_11 = arith.constant 0 : index
    %7 = vector.load %arg2[%c0_9, %c3, %c0_10, %c0_11] : memref<1x4x64x4xf32, #tpu.memory_space<vmem>>, vector<1x1x64x4xf32>
    %8 = vector.shape_cast %7 : vector<1x1x64x4xf32> to vector<64x4xf32>
    %9 = arith.maximumf %6, %8 : vector<64x4xf32>
    %10 = arith.maximumf %4, %9 : vector<64x4xf32>
    %11 = arith.truncf %10 : vector<64x4xf32> to vector<64x4xbf16>
    %c0_12 = arith.constant 0 : index
    %c0_13 = arith.constant 0 : index
    %12 = vector.load %arg3[%c0_12, %c0_13] : memref<4x8xbf16, #tpu.memory_space<vmem>>, vector<4x8xbf16>
    %cst = arith.constant dense<0.000000e+00> : vector<64x8xf32>
    %13 = tpu.matmul %11, %12, %cst {dimension_numbers = #tpu.dot_dimension_numbers<[1], [0], [0], [1], [0, 0, 1, 1], [], []>} : vector<64x4xbf16>, vector<4x8xbf16>, vector<64x8xf32> -> vector<64x8xf32>
    %c0_14 = arith.constant 0 : index
    %c0_15 = arith.constant 0 : index
    %c0_16 = arith.constant 0 : index
    %14 = vector.load %arg4[%c0_14, %c0_15, %c0_16] : memref<1x64x8xf32, #tpu.memory_space<vmem>>, vector<1x64x8xf32>
    %15 = vector.shape_cast %14 : vector<1x64x8xf32> to vector<64x8xf32>
    %16 = vector.shape_cast %13 : vector<64x8xf32> to vector<1x64x8xf32>
    tpu.vector_store %arg4[%c0_14, %c0_15, %c0_16], %16 {strides = array<i32>} : memref<1x64x8xf32, #tpu.memory_space<vmem>>, vector<1x64x8xf32>,
    return
  }
  func.func @transform_0(%arg0: i32, %arg1: i32) -> (i32, i32, i32, i32) {
    %c0_i32 = arith.constant 0 : i32
    %c0_i32_0 = arith.constant 0 : i32
    %c0_i32_1 = arith.constant 0 : i32
    return %arg0, %c0_i32, %arg1, %c0_i32_0 : i32, i32, i32, i32
  }
  func.func @transform_1(%arg0: i32, %arg1: i32) -> (i32, i32) {
    %c0_i32 = arith.constant 0 : i32
    %c0_i32_0 = arith.constant 0 : i32
    %c0_i32_1 = arith.constant 0 : i32
    return %c0_i32, %c0_i32_0 : i32, i32
  }
  func.func @transform_2(%arg0: i32, %arg1: i32) -> (i32, i32, i32) {
    %c0_i32 = arith.constant 0 : i32
    %c0_i32_0 = arith.constant 0 : i32
    return %arg0, %arg1, %c0_i32 : i32, i32, i32
  }
}

</mosaic_0001>

<llo_original>
// kernel: tpu_custom_call.1
$region0: #{tpu_custom_call.1}
  #allocation0 [shape = 'u32[]', space=smem, size = 0x4, offset = 0x4, fixed_abs, tag = 'smem constant byte address 0x4 - core index']
  #allocation1 [shape = 'u32[144,128]{1,0:T(1,128)}', space=vmem, size = 0x12000, scoped, tag = 'internal scratch']
  %s0 = inlined_call_operand.vmem [shape: f32[2,4,64,4], index: 0, kind: input, shape index: {}]
  %s1 = inlined_call_operand.vmem [shape: bf16[4,8], index: 1, kind: input, shape index: {}]
  %s2 = inlined_call_operand.vmem [shape: f32[2,64,8], index: 2, kind: output, shape index: {}]
  %s3 = sld [smem:[#allocation0]]
  $region41: #{tpu_custom_call.1} parent=0
    _
  %s5 = ssub.s32 1, %s3
  %s6 = scalar_select 0, %s5, %s3
  loop: start=0, step=1, limit=4
  $region2: #{tpu_custom_call.1} parent=0 // loop_pre_header
    _
  $region3: #{tpu_custom_call.1} parent=0 // loop_header
    %s8 = sphi 0, %s12
    %p9 = scmp.ge.s32.totalorder %s8, 4
    %s15 = sphi 0, %s27
    %s16 = sphi 0, %s23
    %s17 = sphi 0, %s15
    %s18 = sphi 0, %s16
    %s19 = sphi 0, %s17
    %s20 = sphi 0, %s18
    %s32 = sphi 0, %s34
    %s35 = sphi 0, %s32
    %s36 = sphi 0, %s35
    %s52 = sphi 0, %s36
    %s56 = sphi 0, %s56
    %s58 = sphi 0, %s56
    %s59 = sphi 0, %s58
    %s73 = sphi 0, %s59
    %s81 = sphi 0, %s83
    %s84 = sphi 0, %s81
    %s85 = sphi 0, %s84
    %s101 = sphi 0, %s85
  $region4: #{tpu_custom_call.1} parent=0 // loop_header_branch
    %11 = sbr.rel (%p9) target = $region8
  $region5: #{tpu_custom_call.1} parent=0 // loop_body
    %s13 = ssub.s32 %s8, 1
    %s14 = ssub.s32 %s8, 2
    %s21 = sadd.s32 1, %s16
    %p22 = scmp.ge.s32.totalorder %s21, 1
    %s23 = scalar_select %p22, 0, %s21
    %s24 = sadd.s32 1, %s15
    %s25 = scalar_select %p22, %s24, %s15
    %p26 = scmp.ge.s32.totalorder %s25, 2
    %s27 = scalar_select %p26, 0, %s25
    %s28 = ssub.s32 %s15, %s27
    %s29 = ssub.s32 %s16, %s23
    %s30 = sor.u32 %s28, %s29
    %p31 = scmp.eq.s32.totalorder %s30, 0
    %s33 = sadd.s32 %s32, 1
    %s34 = scalar_select %p31, %s32, %s33
    %p37 = pneg %p31
    %p38 = scmp.eq.s32.totalorder %s8, 1
    %p39 = por %p37, %p38
    %p40 = scmp.ne.s32.totalorder %s32, %s35
    %p41 = scmp.eq.s32.totalorder %s8, 0
    %p42 = por %p40, %p41
    %p43 = scmp.ne.s32.totalorder %s32, %s35
    %p44 = scmp.eq.s32.totalorder %s13, 1
    %p45 = por %p43, %p44
    %p46 = scmp.ne.s32.totalorder %s35, %s36
    %p47 = scmp.eq.s32.totalorder %s13, 0
    %p48 = por %p46, %p47
    %p49 = scmp.ne.s32.totalorder %s35, %s36
    %p50 = scmp.eq.s32.totalorder %s14, 1
    %p51 = por %p49, %p50
    %p53 = scmp.ne.s32.totalorder %s36, %s52
    %p54 = scmp.eq.s32.totalorder %s14, 0
    %p55 = por %p53, %p54
    %s57 = sadd.s32 %s56, 1
    %p60 = scmp.eq.s32.totalorder %s8, 1
    %p61 = scmp.ne.s32.totalorder %s56, %s58
    %p62 = scmp.eq.s32.totalorder %s8, 0
    %p63 = por %p61, %p62
    %p64 = scmp.ne.s32.totalorder %s56, %s58
    %p65 = scmp.eq.s32.totalorder %s13, 1
    %p66 = por %p64, %p65
    %p67 = scmp.ne.s32.totalorder %s58, %s59
    %p68 = scmp.eq.s32.totalorder %s13, 0
    %p69 = por %p67, %p68
    %p70 = scmp.ne.s32.totalorder %s58, %s59
    %p71 = scmp.eq.s32.totalorder %s14, 1
    %p72 = por %p70, %p71
    %p74 = scmp.ne.s32.totalorder %s59, %s73
    %p75 = scmp.eq.s32.totalorder %s14, 0
    %p76 = por %p74, %p75
    %s77 = ssub.s32 %s15, %s27
    %s78 = ssub.s32 %s16, %s23
    %s79 = sor.u32 %s77, %s78
    %p80 = scmp.eq.s32.totalorder %s79, 0
    %s82 = sadd.s32 %s81, 1
    %s83 = scalar_select %p80, %s81, %s82
    %p86 = pneg %p80
    %p87 = scmp.eq.s32.totalorder %s8, 1
    %p88 = por %p86, %p87
    %p89 = scmp.ne.s32.totalorder %s81, %s84
    %p90 = scmp.eq.s32.totalorder %s8, 0
    %p91 = por %p89, %p90
    %p92 = scmp.ne.s32.totalorder %s81, %s84
    %p93 = scmp.eq.s32.totalorder %s13, 1
    %p94 = por %p92, %p93
    %p95 = scmp.ne.s32.totalorder %s84, %s85
    %p96 = scmp.eq.s32.totalorder %s13, 0
    %p97 = por %p95, %p96
    %p98 = scmp.ne.s32.totalorder %s84, %s85
    %p99 = scmp.eq.s32.totalorder %s14, 1
    %p100 = por %p98, %p99
    %p102 = scmp.ne.s32.totalorder %s85, %s101
    %p103 = scmp.eq.s32.totalorder %s14, 0
    %p104 = por %p102, %p103
    %p105 = scmp.le.s32.totalorder 1, %s8
    %p106 = scmp.lt.s32.totalorder %s8, 3
    %p107 = pnand %p105, %p106
    %p108 = pneg %p107
    // Predicated region
    $region9: #{tpu_custom_call.1} parent=5 // pred_check
      _
    $region10: #{tpu_custom_call.1} parent=5 // pred_check_branch
      %110 = sbr.rel (%p107) target = $region12
    $region11: #{tpu_custom_call.1} parent=5 // pred_region
      %s111 = ssub.s32 %s8, 1
      // Predicated region
      $region13: #{tpu_custom_call.1} parent=11 // pred_check
        %p112 = pneg %p69
      $region14: #{tpu_custom_call.1} parent=11 // pred_check_branch
        %114 = sbr.rel (%p112) target = $region16
      $region15: #{tpu_custom_call.1} parent=11 // pred_region
        _
      $region16: #{tpu_custom_call.1} parent=11 // pred_fallthru
        _
    $region12: #{tpu_custom_call.1} parent=5 // pred_fallthru
      _
    %p115 = scmp.lt.s32.totalorder %s8, 2
    // Predicated region
    $region17: #{tpu_custom_call.1} parent=5 // pred_check
      %p116 = pneg %p115
    $region18: #{tpu_custom_call.1} parent=5 // pred_check_branch
      %118 = sbr.rel (%p116) target = $region20
    $region19: #{tpu_custom_call.1} parent=5 // pred_region
      // Predicated region
      $region21: #{tpu_custom_call.1} parent=19 // pred_check
        %p119 = pneg %p42
      $region22: #{tpu_custom_call.1} parent=19 // pred_check_branch
        %121 = sbr.rel (%p119) target = $region24
      $region23: #{tpu_custom_call.1} parent=19 // pred_region
        %s122 = smul.u32 8, %s16
        %p123 = scmp.lt.s32.totalorder %s15, 1
        %s124 = scalar_select %p123, %s15, 1
        %p125 = scmp.lt.s32.totalorder %s122, 7
        %s126 = scalar_select %p125, %s122, 7
        %s127 = smul.addr %s124, 32
        %s128 = sadd.s32 %s126, %s127
        %s129 = smul.addr %s128, 8
        %s130 = scalar_lea.vmem %s0, %s129
        %s131 = smul.u32 8, %s16
      $region24: #{tpu_custom_call.1} parent=19 // pred_fallthru
        _
    $region20: #{tpu_custom_call.1} parent=5 // pred_fallthru
      _
    %p132 = scmp.le.s32.totalorder 1, %s8
    %p133 = scmp.lt.s32.totalorder %s8, 3
    %p134 = pnand %p132, %p133
    %p135 = pneg %p134
    // Predicated region
    $region25: #{tpu_custom_call.1} parent=5 // pred_check
      _
    $region26: #{tpu_custom_call.1} parent=5 // pred_check_branch
      %137 = sbr.rel (%p134) target = $region28
    $region27: #{tpu_custom_call.1} parent=5 // pred_region
      %s138 = ssub.s32 %s8, 1
      %s139 = smul.u32 8, %s18
      %p140 = scmp.lt.s32.totalorder %s17, 1
      %s141 = scalar_select %p140, %s17, 1
      %p142 = scmp.lt.s32.totalorder %s139, 7
      %s143 = scalar_select %p142, %s139, 7
      %s144 = smul.addr %s141, 32
      %s145 = sadd.s32 %s143, %s144
      %s146 = smul.addr %s145, 8
      %s147 = scalar_lea.vmem %s0, %s146
      %p148 = pneg %p48
      %p149 = pneg %p45
      %p150 = pneg %p69
      %p151 = pneg %p66
      %p152 = pneg %p97
      %p153 = pneg %p94
      %s154 = smul.u32 8, %s18
      %p155 = scmp.lt.s32.totalorder %s17, 1
      %s156 = scalar_select %p155, %s17, 1
      %p157 = scmp.lt.s32.totalorder %s154, 7
      %s158 = scalar_select %p157, %s154, 7
      %s159 = smul.addr %s156, 8
      %s160 = sadd.s32 %s158, %s159
      %s161 = smul.addr %s160, 8
      %s162 = scalar_lea.vmem %s2, %s161
      %s163 = smul.u32 8, %s18
      %p164 = scmp.lt.s32.totalorder %s17, 1
      %s165 = scalar_select %p164, %s17, 1
      %p166 = scmp.lt.s32.totalorder %s163, 7
      %s167 = scalar_select %p166, %s163, 7
      %s168 = smul.addr %s165, 32
      %s169 = sadd.s32 %s167, %s168
      %s170 = smul.addr %s169, 8
      %s171 = scalar_lea.vmem %s0, %s170
      %s172 = smul.u32 8, %s18
      %s173 = smul.u32 8, %s18
      %p174 = scmp.lt.s32.totalorder %s17, 1
      %s175 = scalar_select %p174, %s17, 1
      %p176 = scmp.lt.s32.totalorder %s173, 7
      %s177 = scalar_select %p176, %s173, 7
      %s178 = smul.addr %s175, 8
      %s179 = sadd.s32 %s177, %s178
      %s180 = smul.addr %s179, 8
      %s181 = scalar_lea.vmem %s2, %s180
      %s182 = smul.u32 8, %s18
      %v184 = vld [vmem:[%s171] sm:$0xff]
      %v185 = vld [vmem:[%s171 + $0x8] sm:$0xff]
      %v186 = vld [vmem:[%s171 + $0x10] sm:$0xff]
      %v187 = vld [vmem:[%s171 + $0x18] sm:$0xff]
      %v188 = vld [vmem:[%s171 + $0x20] sm:$0xff]
      %v189 = vld [vmem:[%s171 + $0x28] sm:$0xff]
      %v190 = vld [vmem:[%s171 + $0x30] sm:$0xff]
      %v191 = vld [vmem:[%s171 + $0x38] sm:$0xff]
      %s192 = scalar_lea.vmem %s171, 64
      %v193 = vld [vmem:[%s192] sm:$0xff]
      %v194 = vld [vmem:[%s192 + $0x8] sm:$0xff]
      %v195 = vld [vmem:[%s192 + $0x10] sm:$0xff]
      %v196 = vld [vmem:[%s192 + $0x18] sm:$0xff]
      %v197 = vld [vmem:[%s192 + $0x20] sm:$0xff]
      %v198 = vld [vmem:[%s192 + $0x28] sm:$0xff]
      %v199 = vld [vmem:[%s192 + $0x30] sm:$0xff]
      %v200 = vld [vmem:[%s192 + $0x38] sm:$0xff]
      %v201 = vmax.f32 %v184, %v193
      %v202 = vmax.f32 %v185, %v194
      %v203 = vmax.f32 %v186, %v195
      %v204 = vmax.f32 %v187, %v196
      %v205 = vmax.f32 %v188, %v197
      %v206 = vmax.f32 %v189, %v198
      %v207 = vmax.f32 %v190, %v199
      %v208 = vmax.f32 %v191, %v200
      %s209 = scalar_lea.vmem %s171, 128
      %v210 = vld [vmem:[%s209] sm:$0xff]
      %v211 = vld [vmem:[%s209 + $0x8] sm:$0xff]
      %v212 = vld [vmem:[%s209 + $0x10] sm:$0xff]
      %v213 = vld [vmem:[%s209 + $0x18] sm:$0xff]
      %v214 = vld [vmem:[%s209 + $0x20] sm:$0xff]
      %v215 = vld [vmem:[%s209 + $0x28] sm:$0xff]
      %v216 = vld [vmem:[%s209 + $0x30] sm:$0xff]
      %v217 = vld [vmem:[%s209 + $0x38] sm:$0xff]
      %s218 = scalar_lea.vmem %s171, 192
      %v219 = vld [vmem:[%s218] sm:$0xff]
      %v220 = vld [vmem:[%s218 + $0x8] sm:$0xff]
      %v221 = vld [vmem:[%s218 + $0x10] sm:$0xff]
      %v222 = vld [vmem:[%s218 + $0x18] sm:$0xff]
      %v223 = vld [vmem:[%s218 + $0x20] sm:$0xff]
      %v224 = vld [vmem:[%s218 + $0x28] sm:$0xff]
      %v225 = vld [vmem:[%s218 + $0x30] sm:$0xff]
      %v226 = vld [vmem:[%s218 + $0x38] sm:$0xff]
      %v227 = vmax.f32 %v210, %v219
      %v228 = vmax.f32 %v211, %v220
      %v229 = vmax.f32 %v212, %v221
      %v230 = vmax.f32 %v213, %v222
      %v231 = vmax.f32 %v214, %v223
      %v232 = vmax.f32 %v215, %v224
      %v233 = vmax.f32 %v216, %v225
      %v234 = vmax.f32 %v217, %v226
      %v235 = vmax.f32 %v201, %v227
      %v236 = vmax.f32 %v202, %v228
      %v237 = vmax.f32 %v203, %v229
      %v238 = vmax.f32 %v204, %v230
      %v239 = vmax.f32 %v205, %v231
      %v240 = vmax.f32 %v206, %v232
      %v241 = vmax.f32 %v207, %v233
      %v242 = vmax.f32 %v208, %v234
      %v243 = vpack.c.bf16 %v236, %v235
      %v244 = vpack.c.bf16 %v238, %v237
      %v245 = vpack.c.bf16 %v240, %v239
      %v246 = vpack.c.bf16 %v242, %v241
      %v247 = vld [vmem:[%s1] sm:$0x3]
      %vm248 = vcmask 31744
      %v250 = vsel %vm248, %v243, 0
      %v253 = vsel %vm248, %v244, 0
      %v256 = vsel %vm248, %v245, 0
      %v259 = vsel %vm248, %v246, 0
      %vm261 = vcmask 1041408
      %v263 = vsel %vm261, %v247, 0
      %265 = vmatprep.subr.bf16.mxu0 0
      %266 = vmatpush1.bf16.msra.mxu0 %v263
      %267 = vmatprep.subr.bf16.mxu0 0
      %268 = vmatpush1.bf16.msra.mxu0 0
      %269 = vmatprep.subr.bf16.mxu0 0
      %270 = vmatpush1.bf16.msra.mxu0 0
      %271 = vmatprep.subr.bf16.mxu0 0
      %272 = vmatpush1.bf16.msra.mxu0 0
      %273 = vmatprep.subr.bf16.mxu0 0
      %274 = vmatpush1.bf16.msra.mxu0 0
      %275 = vmatprep.subr.bf16.mxu0 0
      %276 = vmatpush1.bf16.msra.mxu0 0
      %277 = vmatprep.subr.bf16.mxu0 0
      %278 = vmatpush1.bf16.msra.mxu0 0
      %279 = vmatprep.subr.bf16.mxu0 0
      %280 = vmatpush1.bf16.msra.mxu0 0
      %281 = vmatprep.subr.bf16.mxu0 0
      %282 = vmatpush1.bf16.msra.mxu0 0
      %283 = vmatprep.subr.bf16.mxu0 0
      %284 = vmatpush1.bf16.msra.mxu0 0
      %285 = vmatprep.subr.bf16.mxu0 0
      %286 = vmatpush1.bf16.msra.mxu0 0
      %287 = vmatprep.subr.bf16.mxu0 0
      %288 = vmatpush1.bf16.msra.mxu0 0
      %289 = vmatprep.subr.bf16.mxu0 0
      %290 = vmatpush1.bf16.msra.mxu0 0
      %291 = vmatprep.subr.bf16.mxu0 0
      %292 = vmatpush1.bf16.msra.mxu0 0
      %293 = vmatprep.subr.bf16.mxu0 0
      %294 = vmatpush1.bf16.msra.mxu0 0
      %295 = vmatprep.subr.bf16.mxu0 0
      %296 = vmatpush1.bf16.msra.mxu0 0
      %297 = vmatprep.mubr.bf16.mxu0 0
      %298 = vmatmul.mubr.bf16.gmra.mrb[0].mxu0 %v250
      %v299 = vpop.f32.mrb[0].mxu0
      %v300 = vadd.f32 0.0, %v299
      %v301 = vpop.f32.mrb[0].mxu0
      %v302 = vpop.f32.mrb[0].mxu0
      %v303 = vadd.f32 0.0, %v302
      %v304 = vpop.f32.mrb[0].mxu0
      %305 = vmatprep.mubr.bf16.mxu0 0
      %306 = vmatmul.mubr.bf16.gmra.mrb[0].mxu0 %v253
      %v307 = vpop.f32.mrb[0].mxu0
      %v308 = vadd.f32 0.0, %v307
      %v309 = vpop.f32.mrb[0].mxu0
      %v310 = vpop.f32.mrb[0].mxu0
      %v311 = vadd.f32 0.0, %v310
      %v312 = vpop.f32.mrb[0].mxu0
      %313 = vmatprep.mubr.bf16.mxu0 0
      %314 = vmatmul.mubr.bf16.gmra.mrb[0].mxu0 %v256
      %v315 = vpop.f32.mrb[0].mxu0
      %v316 = vadd.f32 0.0, %v315
      %v317 = vpop.f32.mrb[0].mxu0
      %v318 = vpop.f32.mrb[0].mxu0
      %v319 = vadd.f32 0.0, %v318
      %v320 = vpop.f32.mrb[0].mxu0
      %321 = vmatprep.mubr.bf16.mxu0 0
      %322 = vmatmul.mubr.bf16.gmra.mrb[0].mxu0 %v259
      %v323 = vpop.f32.mrb[0].mxu0
      %v324 = vadd.f32 0.0, %v323
      %v325 = vpop.f32.mrb[0].mxu0
      %v326 = vpop.f32.mrb[0].mxu0
      %v327 = vadd.f32 0.0, %v326
      %v328 = vpop.f32.mrb[0].mxu0
      %329 = vdwg.mxu0
      %vm330 = vcmask 64512
      %331 = vst.msk [vmem:[%s181] sm:$0xff] %vm330, %v300
      %332 = vst.msk [vmem:[%s181 + $0x8] sm:$0xff] %vm330, %v303
      %333 = vst.msk [vmem:[%s181 + $0x10] sm:$0xff] %vm330, %v308
      %334 = vst.msk [vmem:[%s181 + $0x18] sm:$0xff] %vm330, %v311
      %335 = vst.msk [vmem:[%s181 + $0x20] sm:$0xff] %vm330, %v316
      %336 = vst.msk [vmem:[%s181 + $0x28] sm:$0xff] %vm330, %v319
      %337 = vst.msk [vmem:[%s181 + $0x30] sm:$0xff] %vm330, %v324
      %338 = vst.msk [vmem:[%s181 + $0x38] sm:$0xff] %vm330, %v327
      %s339 = smul.u32 8, %s18
      %p340 = scmp.lt.s32.totalorder %s17, 1
      %s341 = scalar_select %p340, %s17, 1
      %p342 = scmp.lt.s32.totalorder %s339, 7
      %s343 = scalar_select %p342, %s339, 7
      %s344 = smul.addr %s341, 8
      %s345 = sadd.s32 %s343, %s344
      %s346 = smul.addr %s345, 8
      %s347 = scalar_lea.vmem %s2, %s346
      // Predicated region
      $region29: #{tpu_custom_call.1} parent=27 // pred_check
        %p348 = pneg %p94
      $region30: #{tpu_custom_call.1} parent=27 // pred_check_branch
        %350 = sbr.rel (%p348) target = $region32
      $region31: #{tpu_custom_call.1} parent=27 // pred_region
        %s351 = smul.u32 8, %s18
      $region32: #{tpu_custom_call.1} parent=27 // pred_fallthru
        _
    $region28: #{tpu_custom_call.1} parent=5 // pred_fallthru
      _
    %p352 = scmp.le.s32.totalorder 2, %s8
    // Predicated region
    $region33: #{tpu_custom_call.1} parent=5 // pred_check
      %p353 = pneg %p352
    $region34: #{tpu_custom_call.1} parent=5 // pred_check_branch
      %355 = sbr.rel (%p353) target = $region36
    $region35: #{tpu_custom_call.1} parent=5 // pred_region
      %s356 = ssub.s32 %s8, 2
      // Predicated region
      $region37: #{tpu_custom_call.1} parent=35 // pred_check
        %p357 = pneg %p100
      $region38: #{tpu_custom_call.1} parent=35 // pred_check_branch
        %359 = sbr.rel (%p357) target = $region40
      $region39: #{tpu_custom_call.1} parent=35 // pred_region
        %s360 = smul.u32 8, %s20
        %p361 = scmp.lt.s32.totalorder %s19, 1
        %s362 = scalar_select %p361, %s19, 1
        %p363 = scmp.lt.s32.totalorder %s360, 7
        %s364 = scalar_select %p363, %s360, 7
        %s365 = smul.addr %s362, 8
        %s366 = sadd.s32 %s364, %s365
        %s367 = smul.addr %s366, 8
        %s368 = scalar_lea.vmem %s2, %s367
      $region40: #{tpu_custom_call.1} parent=35 // pred_fallthru
        _
    $region36: #{tpu_custom_call.1} parent=5 // pred_fallthru
      _
  $region6: #{tpu_custom_call.1} parent=0 // loop_footer
    %s12 = sadd.s32 1, %s8
  $region7: #{tpu_custom_call.1} parent=0 // loop_footer_branch
    %7 = sbr.rel target = $region3
  $region8: #{tpu_custom_call.1} parent=0 // loop_exit
    _

</llo_original>
